<compile_context>
chip_gen: v7x
topology: tpu7x:2x2x1
jax: 0.10.0
libtpu: 0.0.40
codegen_flags: <defaults>
</compile_context>

<pallas_src>
import functools

import jax
import jax.numpy as jnp
from jax.experimental import pallas as pl
from jax.experimental.pallas import tpu as pltpu

P_DROP = 0.1
MAX_BLOCK_BYTES = 1 << 20   # ~1 MiB per stream per block


def _round_up(a: int, b: int) -> int:
    return -(-a // b) * b


def make_positional_encoding(max_seq_len: int, d_model: int) -> jnp.ndarray:
    """Same construction as the PyTorch __init__ (deterministic f32 buffer)."""
    position = jnp.arange(0, max_seq_len, dtype=jnp.float32)[:, None]          # (S, 1)
    div_term = jnp.exp(
        jnp.arange(0, d_model, 2, dtype=jnp.float32) * (-jnp.log(10000.0) / d_model)
    )                                                                           # (D/2,)
    pe = jnp.zeros((max_seq_len, d_model), dtype=jnp.float32)
    pe = pe.at[:, 0::2].set(jnp.sin(position * div_term))
    pe = pe.at[:, 1::2].set(jnp.cos(position * div_term))
    return pe


def _pe_dropout_kernel(seed_ref, x_ref, pe_ref, o_ref, *, p_drop, training, tile_s):
    # Hot path: y = x + pe (computed in f32, cast back to x dtype on store).
    y = x_ref[...].astype(jnp.float32) + pe_ref[...].astype(jnp.float32)

    if training and p_drop > 0.0:
        # Stateless per-element RNG: cheap 2-multiply mix of the element's
        # (row, col) position in the logical [S, D] array -> tiling-invariant
        # mask, distinct per tile, no int->float convert.
        d_model = y.shape[1]
        row0 = (pl.program_id(0) * tile_s).astype(jnp.uint32)
        rows = jax.lax.broadcasted_iota(jnp.int32, y.shape, 0).astype(jnp.uint32) + row0
        cols = jax.lax.broadcasted_iota(jnp.int32, y.shape, 1).astype(jnp.uint32)
        idx = rows * jnp.uint32(d_model) + cols

        seed = seed_ref[0].astype(jnp.uint32)
        h = idx ^ (seed * jnp.uint32(0x9E3779B9))        # scalar mul, vector xor
        h = (h ^ (h >> 16)) * jnp.uint32(0x21F0AAAD)     # lowbias32-style mixer
        h = (h ^ (h >> 15)) * jnp.uint32(0xD35A2D97)     # (2 vector multiplies)
        h = h ^ (h >> 15)

        # Integer-domain keep test: P(keep) = 1 - p_drop.
        threshold = jnp.uint32(min(int(round(p_drop * (2.0 ** 32))), 2 ** 32 - 1))
        keep = h >= threshold
        scale = jnp.float32(1.0 / (1.0 - p_drop))
        y = jnp.where(keep, y * scale, jnp.float32(0.0))

    o_ref[...] = y.astype(o_ref.dtype)


def positional_encoding_forward(x, pe_table, *, seed=0, training=True, p_drop=P_DROP):
    """x: [S, D].  Returns dropout(x + pe_table[:S, :]) with the same dtype as x."""
    S, D = x.shape
    assert pe_table.shape[1] == D and pe_table.shape[0] >= S, "pe_table too small"

    x_item = jnp.dtype(x.dtype).itemsize
    pe_item = jnp.dtype(pe_table.dtype).itemsize

    # ---- tile selection (bounded padding waste, VMEM budget, megacore) ----
    row_bytes = D * max(x_item, pe_item)
    max_tile_s = max(8, (MAX_BLOCK_BYTES // row_bytes) // 8 * 8)
    num_tiles = pl.cdiv(S, max_tile_s)
    # v7x megacore: force >= 2 grid steps when one tile would cover a sizeable
    # input, so the "parallel" grid axis can be split across both TensorCores.
    if num_tiles == 1 and S >= 16 and S * row_bytes >= (128 << 10):
        num_tiles = 2
    tile_s = _round_up(pl.cdiv(S, num_tiles), 8)
    grid = (pl.cdiv(S, tile_s),)

    seed_arr = jnp.asarray([seed], dtype=jnp.int32)

    kernel = functools.partial(
        _pe_dropout_kernel, p_drop=p_drop, training=training, tile_s=tile_s
    )

    elems = S * D
    cost = pl.CostEstimate(
        flops=elems * (12 if (training and p_drop > 0.0) else 1),
        transcendentals=0,
        bytes_accessed=elems * (2 * x_item + pe_item),
    )

    return pl.pallas_call(
        kernel,
        out_shape=jax.ShapeDtypeStruct((S, D), x.dtype),
        grid_spec=pltpu.PrefetchScalarGridSpec(
            num_scalar_prefetch=1,          # seed lives in SMEM
            grid=grid,
            in_specs=[
                # x rows
                pl.BlockSpec((tile_s, D), lambda i, seed_ref: (i, 0)),
                # PE rows sliced straight out of the full [max_seq_len, D] HBM buffer
                pl.BlockSpec((tile_s, D), lambda i, seed_ref: (i, 0)),
            ],
            out_specs=pl.BlockSpec((tile_s, D), lambda i, seed_ref: (i, 0)),
        ),
        compiler_params=pltpu.CompilerParams(
            # Independent tiles -> shard grid across v7x's two TensorCores.
            dimension_semantics=("parallel",),
        ),
        cost_estimate=cost,
    )(seed_arr, x, pe_table)


if __name__ == "__main__":
    d_model = 32
    max_seq_len = 100
    seq_len = 8

    key = jax.random.PRNGKey(0)
    x = jax.random.normal(key, (seq_len, d_model), dtype=jnp.float32)

    pe_table = make_positional_encoding(max_seq_len, d_model)
    ref_eval = x + pe_table[:seq_len, :]

    # eval mode: identity dropout; must match x + pe exactly.
    out_eval = positional_encoding_forward(x, pe_table, training=False)
    out_eval = jax.block_until_ready(out_eval)
    assert out_eval.shape == (seq_len, d_model)
    assert jnp.allclose(out_eval, ref_eval, atol=1e-6), "eval-mode mismatch vs reference"

    # training mode: deterministic dropout given the seed.
    out_train = positional_encoding_forward(x, pe_table, seed=0, training=True)
    out_train = jax.block_until_ready(out_train)
    assert out_train.shape == (seq_len, d_model)

    # Kept elements must equal (x + pe) / (1 - p); keep-rate should be ~0.9.
    keep_mask = out_train != 0.0
    frac_kept = float(jnp.mean(keep_mask.astype(jnp.float32)))
    assert 0.7 < frac_kept < 1.0, f"unexpected dropout keep rate: {frac_kept}"
    kept_ref = jnp.where(keep_mask, ref_eval / (1.0 - P_DROP), 0.0)
    kept_out = jnp.where(keep_mask, out_train, 0.0)
    assert jnp.allclose(kept_out, kept_ref, atol=1e-5), "train-mode kept values mismatch"

    print("KERNEL_OK")
</pallas_src>

<mosaic_0001>
module attributes {stable_mosaic.version = 11 : i64} {
  func.func @_pe_dropout_kernel(%arg0: i32, %arg1: memref<1xi32, #tpu.memory_space<smem>>, %arg2: memref<8x32xf32, #tpu.memory_space<vmem>>, %arg3: memref<8x32xf32, #tpu.memory_space<vmem>>, %arg4: memref<8x32xf32, #tpu.memory_space<vmem>>) attributes {dimension_semantics = [#tpu.dimension_semantics<parallel>], iteration_bounds = array<i64: 1>, scalar_prefetch = 1 : i64, scratch_operands = 0 : i64, tpu.core_type = #tpu.core_type<tc>, window_params = [{transform_indices = @transform_0, window_bounds = array<i64: 8, 32>}, {transform_indices = @transform_1, window_bounds = array<i64: 8, 32>}, {transform_indices = @transform_2, window_bounds = array<i64: 8, 32>}]} {
    %c0 = arith.constant 0 : index
    %c0_0 = arith.constant 0 : index
    %0 = vector.load %arg2[%c0, %c0_0] : memref<8x32xf32, #tpu.memory_space<vmem>>, vector<8x32xf32>
    %c0_1 = arith.constant 0 : index
    %c0_2 = arith.constant 0 : index
    %1 = vector.load %arg3[%c0_1, %c0_2] : memref<8x32xf32, #tpu.memory_space<vmem>>, vector<8x32xf32>
    %2 = arith.addf %0, %1 : vector<8x32xf32>
    %c0_3 = arith.constant 0 : index
    %c0_4 = arith.constant 0 : index
    %3 = vector.load %arg4[%c0_3, %c0_4] : memref<8x32xf32, #tpu.memory_space<vmem>>, vector<8x32xf32>
    tpu.vector_store %arg4[%c0_3, %c0_4], %2 {strides = array<i32>} : memref<8x32xf32, #tpu.memory_space<vmem>>, vector<8x32xf32>,
    return
  }
  func.func @transform_0(%arg0: i32, %arg1: memref<1xi32, #tpu.memory_space<smem>>) -> (i32, i32) {
    %c0_i32 = arith.constant 0 : i32
    %c0_i32_0 = arith.constant 0 : i32
    return %arg0, %c0_i32 : i32, i32
  }
  func.func @transform_1(%arg0: i32, %arg1: memref<1xi32, #tpu.memory_space<smem>>) -> (i32, i32) {
    %c0_i32 = arith.constant 0 : i32
    %c0_i32_0 = arith.constant 0 : i32
    return %arg0, %c0_i32 : i32, i32
  }
  func.func @transform_2(%arg0: i32, %arg1: memref<1xi32, #tpu.memory_space<smem>>) -> (i32, i32) {
    %c0_i32 = arith.constant 0 : i32
    %c0_i32_0 = arith.constant 0 : i32
    return %arg0, %c0_i32 : i32, i32
  }
}

</mosaic_0001>

<llo_original>
// kernel: tpu_custom_call.1
$region0: #{tpu_custom_call.1}
  #allocation0 [shape = 'u32[]', space=smem, size = 0x4, offset = 0x4, fixed_abs, tag = 'smem constant byte address 0x4 - core index']
  #allocation1 [shape = 'u32[144,128]{1,0:T(1,128)}', space=vmem, size = 0x12000, scoped, tag = 'internal scratch']
  #allocation2 [shape = 's32[1]{0}', space=sflag, size = 0x4, scoped, tag = 'scoped memory for tpu_custom_call.1']
  #allocation3 [shape = 's32[1]{0:T(128)S(6)}', space=smem, size = 0x200, scoped, tag = 'prefetched SMEM operand 0']
  %s0 = inlined_call_operand.<no memory space> [shape: s32[1], index: 0, kind: input, shape index: {}]
  %s1 = inlined_call_operand.vmem [shape: f32[8,32], index: 1, kind: input, shape index: {}]
  %s2 = inlined_call_operand.vmem [shape: f32[100,32], index: 2, kind: input, shape index: {}]
  %s3 = inlined_call_operand.hbm [shape: f32[8,32], index: 3, kind: output, shape index: {}]
  %s4 = sld [smem:[#allocation0]]
  $region18: #{tpu_custom_call.1} parent=0
    _
  %s6 = ssub.s32 1, %s4
  %s7 = scalar_select 0, %s6, %s4
  %8 = sst [smem:[#allocation3]] %s0
  $region1: #{tpu_custom_call.1} parent=0
    #allocation4 [shape = 'u8[4096]{0}', space=vmem, size = 0x1000, scoped, tag = 'output window, operand 0, single buffered']
    #allocation5 [shape = 's32[1]{0}', space=sflag, size = 0x4, scoped, tag = 'scoped memory for tpu_custom_call.1']
    %9 = vsyncpa [#allocation5], 0
    // Predicated region
    $region2: #{tpu_custom_call.1} parent=1 // pred_check
      _
    $region3: #{tpu_custom_call.1} parent=1 // pred_check_branch
      %11 = sbr.rel (0) target = $region5
    $region4: #{tpu_custom_call.1} parent=1 // pred_region
      _
    $region5: #{tpu_custom_call.1} parent=1 // pred_fallthru
      _
    // Predicated region
    $region6: #{tpu_custom_call.1} parent=1 // pred_check
      _
    $region7: #{tpu_custom_call.1} parent=1 // pred_check_branch
      %13 = sbr.rel (0) target = $region9
    $region8: #{tpu_custom_call.1} parent=1 // pred_region
      _
    $region9: #{tpu_custom_call.1} parent=1 // pred_fallthru
      _
    %v14 = vld [vmem:[%s1] sm:$0xff]
    %v15 = vld [vmem:[%s2] sm:$0xff]
    %v16 = vadd.f32 %v14, %v15
    %vm17 = vcmask 261120
    %18 = vst.msk [vmem:[#allocation4] sm:$0xff] %vm17, %v16
    // Predicated region
    $region10: #{tpu_custom_call.1} parent=1 // pred_check
      _
    $region11: #{tpu_custom_call.1} parent=1 // pred_check_branch
      %20 = sbr.rel (0) target = $region13
    $region12: #{tpu_custom_call.1} parent=1 // pred_region
      %s22 = ssub.s32 128, 128
      %23 = vsyncadd [#allocation5], %s22
      %s25 = sshll.u32 [#allocation4], 4
      %s26 = int_to_ptr.vmem [resolvable:$true] %s25
      %28 = dma.vmem_to_hbm [thread:$0]  %s26, 128, %s3, [#allocation5]
    $region13: #{tpu_custom_call.1} parent=1 // pred_fallthru
      _
    // Predicated region
    $region14: #{tpu_custom_call.1} parent=1 // pred_check
      _
    $region15: #{tpu_custom_call.1} parent=1 // pred_check_branch
      %30 = sbr.rel (0) target = $region17
    $region16: #{tpu_custom_call.1} parent=1 // pred_region
      %31 = dma.done [#allocation5], 128
    $region17: #{tpu_custom_call.1} parent=1 // pred_fallthru
      _
    %32 = vsyncpa [#allocation5], 1

</llo_original>
